<compile_context>
chip_gen: v7x
topology: tpu7x:2x2x1
jax: 0.10.0
libtpu: 0.0.40
codegen_flags: <defaults>
</compile_context>

<pallas_src>
import functools
import numpy as np
import jax
import jax.numpy as jnp
from jax.experimental import pallas as pl
from jax.experimental.pallas import tpu as pltpu

SQRT2 = float(np.sqrt(2.0))
VMEM_LIMIT = 48 * 1024 * 1024   # well above the 16/32 MiB scoped default, within v7x's 64 MiB


def _round_up(v, m):
    return ((v + m - 1) // m) * m


# ----------------------------------------------------------------------------
# Pallas kernel 1: tiled modulated matmul   y = ((x * colscale) @ W) + bias
#   grid = (B, P-tiles, N-tiles, K-tiles); f32 VMEM accumulator; K is the innermost
#   ("arbitrary") reduction axis.  Used for the 1x1 convs and the ToRGB layer.
# ----------------------------------------------------------------------------
def _matmul_kernel(x_ref, cs_ref, w_ref, b_ref, o_ref, acc_ref):
    k = pl.program_id(3)

    @pl.when(k == 0)
    def _init():
        acc_ref[...] = jnp.zeros_like(acc_ref)

    x = x_ref[0] * cs_ref[0]                                    # (TP,TK) * (1,TK)
    acc_ref[...] += jnp.dot(x, w_ref[...], preferred_element_type=jnp.float32)

    @pl.when(k == pl.num_programs(3) - 1)
    def _finalize():
        o_ref[0] = acc_ref[...] + b_ref[0]


def pallas_matmul(x, colscale, wmat, bias):
    """x: (B,P,K)  colscale: (B,K)  wmat: (K,N)  bias: (N,)  ->  (B,P,N) float32."""
    B, P, K = x.shape
    N = wmat.shape[1]
    TK = min(512, _round_up(K, 128)); Kp = _round_up(K, TK)
    TN = min(256, _round_up(N, 128)); Np = _round_up(N, TN)
    TP = min(256, _round_up(P, 8));   Pp = _round_up(P, TP)
    xp = jnp.pad(x.astype(jnp.float32), ((0, 0), (0, Pp - P), (0, Kp - K)))
    cs = jnp.pad(colscale.astype(jnp.float32).reshape(B, 1, K), ((0, 0), (0, 0), (0, Kp - K)))
    wp = jnp.pad(wmat.astype(jnp.float32), ((0, Kp - K), (0, Np - N)))
    bp = jnp.pad(bias.astype(jnp.float32).reshape(1, 1, N), ((0, 0), (0, 0), (0, Np - N)))
    out = pl.pallas_call(
        _matmul_kernel,
        out_shape=jax.ShapeDtypeStruct((B, Pp, Np), jnp.float32),
        grid=(B, Pp // TP, Np // TN, Kp // TK),
        in_specs=[
            pl.BlockSpec((1, TP, TK), lambda b, p, n, k: (b, p, k)),
            pl.BlockSpec((1, 1, TK), lambda b, p, n, k: (b, 0, k)),
            pl.BlockSpec((TK, TN), lambda b, p, n, k: (k, n)),
            pl.BlockSpec((1, 1, TN), lambda b, p, n, k: (0, 0, n)),
        ],
        out_specs=pl.BlockSpec((1, TP, TN), lambda b, p, n, k: (b, p, n)),
        scratch_shapes=[pltpu.VMEM((TP, TN), jnp.float32)],
        compiler_params=pltpu.CompilerParams(
            dimension_semantics=("parallel", "parallel", "parallel", "arbitrary"),
            vmem_limit_bytes=VMEM_LIMIT),
    )(xp, cs, wp, bp)
    return out[:, :P, :N]


# ----------------------------------------------------------------------------
# Pallas kernel 2: modulated 3x3 "valid" conv on an NHWC, pre-padded input.
#   Only a 3x width-duplication is done outside (im2col along W); the 3 row taps are
#   shifted matmuls accumulated inside the kernel.  Output channels are tiled.
# ----------------------------------------------------------------------------
def _conv3_kernel(x_ref, s_ref, w_ref, d_ref, b_ref, o_ref, *, HW, W, act, gain):
    # x_ref: (1, (H+2)*W, 3*Cin)  s_ref: (1,1,3*Cin)  w_ref: (3, 3*Cin, TCo)
    # d_ref/b_ref: (1,1,TCo)      o_ref: (1, H*W, TCo)
    s = s_ref[0]
    acc = jnp.dot(x_ref[0, 0:HW, :] * s, w_ref[0], preferred_element_type=jnp.float32)
    acc = acc + jnp.dot(x_ref[0, W:W + HW, :] * s, w_ref[1], preferred_element_type=jnp.float32)
    acc = acc + jnp.dot(x_ref[0, 2 * W:2 * W + HW, :] * s, w_ref[2],
                        preferred_element_type=jnp.float32)
    y = acc * d_ref[0] + b_ref[0]
    if act == "lrelu":
        y = jnp.where(y >= 0.0, y, 0.2 * y)
    if gain != 1.0:
        y = y * gain
    o_ref[0] = y


def pallas_conv3(xpad, styles, wt3, dco, bias, Hout, Wout, act="linear", gain=1.0):
    """xpad: (N,Hout+2,Wout+2,Cin)  styles: (N,Cin)  wt3: (3, 3*Cin, Cout) [kh, kw*Cin+ci, co]
       dco: (N,Cout)  bias: (Cout,)  ->  (N, Hout, Wout, Cout)"""
    N, Hp2, Wp2, Cin = xpad.shape
    assert Hp2 == Hout + 2 and Wp2 == Wout + 2
    Cout = wt3.shape[2]
    K3 = 3 * Cin
    # im2col along W only (3x duplication); row taps handled inside the kernel.
    xw = jnp.concatenate([xpad[:, :, dx:dx + Wout, :] for dx in range(3)], axis=-1)
    xflat = xw.reshape(N, Hp2 * Wout, K3).astype(jnp.float32)
    s3 = jnp.tile(styles.astype(jnp.float32), (1, 3)).reshape(N, 1, K3)
    d = dco.astype(jnp.float32).reshape(N, 1, Cout)
    b = bias.astype(jnp.float32).reshape(1, 1, Cout)
    TCo = 256 if Cout % 256 == 0 else Cout
    HW = Hout * Wout
    kern = functools.partial(_conv3_kernel, HW=HW, W=Wout, act=act, gain=float(gain))
    y = pl.pallas_call(
        kern,
        out_shape=jax.ShapeDtypeStruct((N, HW, Cout), jnp.float32),
        grid=(N, Cout // TCo),
        in_specs=[
            pl.BlockSpec((1, Hp2 * Wout, K3), lambda n, c: (n, 0, 0)),
            pl.BlockSpec((1, 1, K3), lambda n, c: (n, 0, 0)),
            pl.BlockSpec((3, K3, TCo), lambda n, c: (0, 0, c)),
            pl.BlockSpec((1, 1, TCo), lambda n, c: (n, 0, c)),
            pl.BlockSpec((1, 1, TCo), lambda n, c: (0, 0, c)),
        ],
        out_specs=pl.BlockSpec((1, HW, TCo), lambda n, c: (n, 0, c)),
        compiler_params=pltpu.CompilerParams(
            dimension_semantics=("parallel", "parallel"),
            vmem_limit_bytes=VMEM_LIMIT),
    )(xflat, s3, wt3.astype(jnp.float32), d, b)
    return y.reshape(N, Hout, Wout, Cout)


# ----------------------------------------------------------------------------
# Pallas kernel 3: separable 4x4 FIR (upfirdn2d core) in NHWC with per-(n,c) scale,
#   per-channel bias and optional lrelu*gain epilogue.  Channels are tiled on lanes.
# ----------------------------------------------------------------------------
def _fir_kernel(x_ref, sc_ref, b_ref, o_ref, *, taps, H, W, act, gain):
    # x_ref: (1, H+3, W+3, TC)  sc_ref/b_ref: (1,1,1,TC)  o_ref: (1, H, W, TC)
    xv = x_ref[0]
    t0, t1, t2, t3 = taps
    hz = (t0 * xv[:, 0:W, :] + t1 * xv[:, 1:W + 1, :]          # horizontal pass
          + t2 * xv[:, 2:W + 2, :] + t3 * xv[:, 3:W + 3, :])
    y = (t0 * hz[0:H] + t1 * hz[1:H + 1]                        # vertical pass
         + t2 * hz[2:H + 2] + t3 * hz[3:H + 3])
    y = y * sc_ref[0, 0] + b_ref[0, 0]
    if act == "lrelu":
        y = jnp.where(y >= 0.0, y, 0.2 * y)
    if gain != 1.0:
        y = y * gain
    o_ref[0] = y


def pallas_fir(xpad, scale, bias, taps, Hout, Wout, act="linear", gain=1.0):
    """xpad: (N, Hout+3, Wout+3, C)  scale: (N,C)  bias: (C,)  ->  (N, Hout, Wout, C)."""
    N, Hp3, Wp3, C = xpad.shape
    assert Hp3 == Hout + 3 and Wp3 == Wout + 3
    TC = 128 if C % 128 == 0 else C
    sc = scale.astype(jnp.float32).reshape(N, 1, 1, C)
    b = bias.astype(jnp.float32).reshape(1, 1, 1, C)
    kern = functools.partial(_fir_kernel, taps=taps, H=Hout, W=Wout, act=act, gain=float(gain))
    return pl.pallas_call(
        kern,
        out_shape=jax.ShapeDtypeStruct((N, Hout, Wout, C), jnp.float32),
        grid=(N, C // TC),
        in_specs=[
            pl.BlockSpec((1, Hp3, Wp3, TC), lambda n, c: (n, 0, 0, c)),
            pl.BlockSpec((1, 1, 1, TC), lambda n, c: (n, 0, 0, c)),
            pl.BlockSpec((1, 1, 1, TC), lambda n, c: (0, 0, 0, c)),
        ],
        out_specs=pl.BlockSpec((1, Hout, Wout, TC), lambda n, c: (n, 0, 0, c)),
        compiler_params=pltpu.CompilerParams(
            dimension_semantics=("parallel", "parallel"),
            vmem_limit_bytes=VMEM_LIMIT),
    )(xpad.astype(jnp.float32), sc, b)


# ----------------------------------------------------------------------------
# Glue (pure data movement / tiny scalar math, plain XLA)
# ----------------------------------------------------------------------------
def _to_nhwc(t):
    return jnp.transpose(t, (0, 2, 3, 1)).astype(jnp.float32)


def dilate2_pad2(x):
    # NHWC: insert one zero between pixels + pad so a valid 3x3 (resp. 4x4) conv reproduces
    # conv_transpose2d(stride=2) / upfirdn2d(up=2) exactly:  h -> 2h+3.
    zero = jnp.zeros((), x.dtype)
    return jax.lax.pad(x, zero, [(0, 0, 0), (2, 2, 1), (2, 2, 1), (0, 0, 0)])


def affine(w_vec, aff_wmat, aff_b):
    # FullyConnectedLayer (weight gain pre-folded into aff_wmat) -- tiny, plain XLA.
    return jnp.dot(w_vec, aff_wmat) + aff_b


def demod_coefs(styles, wsqT):
    # dcoefs[n,o] = rsqrt( sum_{i,kh,kw} (w[o,i,kh,kw]*styles[n,i])^2 + 1e-8 ) -- tiny, plain XLA.
    return jax.lax.rsqrt(jnp.dot(styles * styles, wsqT) + 1e-8)


# ----------------------------------------------------------------------------
# StyleGAN2 layer forwards (NHWC, calling the Pallas kernels)
# ----------------------------------------------------------------------------
def conv1x1(x, wmat, bias):
    # Conv2dLayer(kernel_size=1, 'linear'): weight gain pre-folded into wmat.
    N, H, W, C = x.shape
    O = wmat.shape[1]
    y = pallas_matmul(x.reshape(N, H * W, C), jnp.ones((N, C), jnp.float32), wmat, bias)
    return y.reshape(N, H, W, O)


def synthesis_layer_up1(x, w_vec, p, gain=1.0):
    # modulated 3x3 conv, up=1, demodulate, +bias, lrelu*sqrt(2)*gain
    N, H, W, Cin = x.shape
    styles = affine(w_vec, p["aff_wmat"], p["aff_b"])
    dco = demod_coefs(styles, p["wsqT"])
    xpad = jnp.pad(x, ((0, 0), (1, 1), (1, 1), (0, 0)))
    return pallas_conv3(xpad, styles, p["wt3"], dco, p["b"], H, W,
                        act="lrelu", gain=SQRT2 * gain)


def synthesis_layer_up2(x, w_vec, p, taps, gain=1.0):
    # modulated 3x3 conv, up=2: transposed conv (as zero-dilated conv with flipped weights)
    # -> 4x4 FIR (gain 4) -> *dcoefs -> +bias -> lrelu*sqrt(2)*gain
    N, h, w, Cin = x.shape
    Cout = p["wt3"].shape[2]
    styles = affine(w_vec, p["aff_wmat"], p["aff_b"])
    dco = demod_coefs(styles, p["wsqT"])
    xd = dilate2_pad2(x)                                   # (N, 2h+3, 2w+3, Cin)
    Ht, Wt = 2 * h + 1, 2 * w + 1
    y = pallas_conv3(xd, styles, p["wt3"], jnp.ones((N, Cout), jnp.float32),
                     jnp.zeros((Cout,), jnp.float32), Ht, Wt, act="linear", gain=1.0)
    ypad = jnp.pad(y, ((0, 0), (1, 1), (1, 1), (0, 0)))    # (N, 2h+3, 2w+3, Cout)
    return pallas_fir(ypad, dco, p["b"], taps, 2 * h, 2 * w, act="lrelu", gain=SQRT2 * gain)


def torgb_layer(x, w_vec, p):
    # ToRGBLayer: styles = affine(w)*1/sqrt(Cin) (folded into aff params); 1x1 modulated conv.
    N, H, W, C = x.shape
    imgC = p["wmat"].shape[1]
    styles = affine(w_vec, p["aff_wmat"], p["aff_b"])
    y = pallas_matmul(x.reshape(N, H * W, C), styles, p["wmat"], p["b"])
    return y.reshape(N, H, W, imgC)


def upsample2d_img(img, taps):
    # upfirdn2d.upsample2d(img, f): zero-insert x2, pad, 4x4 FIR with gain 4.
    N, h, w, C = img.shape
    xd = dilate2_pad2(img)
    return pallas_fir(xd, jnp.ones((N, C), jnp.float32), jnp.zeros((C,), jnp.float32),
                      taps, 2 * h, 2 * w, act="linear", gain=1.0)


# ----------------------------------------------------------------------------
# SynthesisBlockPrior / SynthesisNetworkPrior  (architecture='skip')
# Parameters are generated in PyTorch layout and converted to kernel layout ONCE here.
# ----------------------------------------------------------------------------
def init_block_params(key, in_ch, out_ch, w_dim, res, img_ch):
    ks = iter(jax.random.split(key, 8))
    p = {}

    def synth_layer(kw, ka, cin, cout, flip):
        w = jax.random.normal(kw, (cout, cin, 3, 3), jnp.float32)
        aff_w = jax.random.normal(ka, (cin, w_dim), jnp.float32)
        wk = w[:, :, ::-1, ::-1] if flip else w     # conv_transpose == conv with flipped weights
        return dict(
            wt3=wk.transpose(2, 3, 1, 0).reshape(3, 3 * cin, cout),  # [kh, kw*Cin+ci, co]
            wsqT=jnp.sum(w * w, axis=(2, 3)).T,                       # (Cin, Cout)
            aff_wmat=aff_w.T * (1.0 / np.sqrt(w_dim)),
            aff_b=jnp.ones((cin,), jnp.float32),
            b=jnp.zeros((cout,), jnp.float32))

    if in_ch == 0:
        const = jax.random.normal(next(ks), (out_ch, res, res), jnp.float32)
        p["const_hwc"] = const.transpose(1, 2, 0)
    else:
        w0 = jax.random.normal(next(ks), (in_ch, 2 * in_ch, 1, 1), jnp.float32)
        p["inter0_wmat"] = (w0[:, :, 0, 0] * (1.0 / np.sqrt(2 * in_ch))).T
        p["inter0_b"] = jnp.zeros((in_ch,), jnp.float32)
        p["conv0"] = synth_layer(next(ks), next(ks), in_ch, out_ch, flip=True)
    w1 = jax.random.normal(next(ks), (out_ch, 2 * out_ch, 1, 1), jnp.float32)
    p["inter1_wmat"] = (w1[:, :, 0, 0] * (1.0 / np.sqrt(2 * out_ch))).T
    p["inter1_b"] = jnp.zeros((out_ch,), jnp.float32)
    p["conv1"] = synth_layer(next(ks), next(ks), out_ch, out_ch, flip=False)
    wr = jax.random.normal(next(ks), (img_ch, out_ch, 1, 1), jnp.float32)
    aff_r = jax.random.normal(next(ks), (out_ch, w_dim), jnp.float32)
    rgb_gain = 1.0 / np.sqrt(out_ch)
    p["rgb"] = dict(
        wmat=wr[:, :, 0, 0].T,
        aff_wmat=aff_r.T * (rgb_gain / np.sqrt(w_dim)),
        aff_b=jnp.full((out_ch,), rgb_gain, jnp.float32),
        b=jnp.zeros((img_ch,), jnp.float32))
    return p


def block_forward(p, x, img, cur_ws, prior, in_ch, out_ch, res, fir_taps):
    N = cur_ws.shape[0]
    if in_ch == 0:
        x = jnp.broadcast_to(p["const_hwc"][None], (N, res, res, out_ch)).astype(jnp.float32)
        x = jnp.concatenate([x, _to_nhwc(prior[1])], axis=-1)
        x = conv1x1(x, p["inter1_wmat"], p["inter1_b"])
        x = synthesis_layer_up1(x, cur_ws[:, 0], p["conv1"])
        widx = 1
    else:
        x = jnp.concatenate([x, _to_nhwc(prior[0])], axis=-1)
        x = conv1x1(x, p["inter0_wmat"], p["inter0_b"])
        x = synthesis_layer_up2(x, cur_ws[:, 0], p["conv0"], fir_taps)
        x = jnp.concatenate([x, _to_nhwc(prior[1])], axis=-1)
        x = conv1x1(x, p["inter1_wmat"], p["inter1_b"])
        x = synthesis_layer_up1(x, cur_ws[:, 1], p["conv1"])
        widx = 2
    if img is not None:
        img = upsample2d_img(img, fir_taps)
    y = torgb_layer(x, cur_ws[:, widx], p["rgb"])
    img = img + y if img is not None else y
    return x, img


class SynthesisNetworkPriorJAX:
    def __init__(self, key, w_dim, img_resolution, img_channels,
                 channel_base=32768, channel_max=512):
        self.w_dim = w_dim
        self.img_resolution = img_resolution
        self.img_channels = img_channels
        log2res = int(np.log2(img_resolution))
        self.block_resolutions = [2 ** i for i in range(2, log2res + 1)]
        self.channels_dict = {r: min(channel_base // r, channel_max) for r in self.block_resolutions}
        # resample_filter [1,3,3,1]: 2D filter = outer(f,f)/64, upfirdn gain up^2 = 4.
        # Separable 1-D taps with per-axis gain 2:  [1,3,3,1]/4.
        f1 = np.array([1.0, 3.0, 3.0, 1.0])
        self.fir_taps = tuple(float(v) for v in (f1 / f1.sum() * 2.0))
        self.blocks = []
        self.num_ws = 0
        for i, res in enumerate(self.block_resolutions):
            in_ch = self.channels_dict[res // 2] if res > 4 else 0
            out_ch = self.channels_dict[res]
            num_conv = 1 if in_ch == 0 else 2
            self.blocks.append(dict(
                res=res, in_ch=in_ch, out_ch=out_ch, num_conv=num_conv,
                params=init_block_params(jax.random.fold_in(key, i), in_ch, out_ch,
                                         w_dim, res, img_channels)))
            self.num_ws += num_conv
            if res == img_resolution:
                self.num_ws += 1  # torgb of last block

    def __call__(self, ws, priors):
        assert ws.shape[1] == self.num_ws and ws.shape[2] == self.w_dim
        assert len(priors) == len(self.block_resolutions)
        ws = ws.astype(jnp.float32)
        block_ws, w_idx = [], 0
        for b in self.blocks:
            block_ws.append(ws[:, w_idx:w_idx + b["num_conv"] + 1])  # num_torgb == 1 (skip arch)
            w_idx += b["num_conv"]
        x = img = None
        for b, cur_ws, cur_prior in zip(self.blocks, block_ws, priors):
            x, img = block_forward(b["params"], x, img, cur_ws, cur_prior,
                                   b["in_ch"], b["out_ch"], b["res"], self.fir_taps)
        return jnp.transpose(img, (0, 3, 1, 2))   # back to NCHW for the external interface


# ----------------------------------------------------------------------------
if __name__ == "__main__":
    key = jax.random.PRNGKey(0)
    N = 2
    w_dim = 16
    img_resolution = 16
    img_channels = 3
    # small synthetic channel config: {4:16, 8:16, 16:8}
    net = SynthesisNetworkPriorJAX(jax.random.fold_in(key, 100), w_dim, img_resolution,
                                   img_channels, channel_base=128, channel_max=16)

    ws = jax.random.normal(jax.random.fold_in(key, 1), (N, net.num_ws, w_dim), jnp.float32)

    priors = []
    for i, res in enumerate(net.block_resolutions):
        in_ch = net.channels_dict[res // 2] if res > 4 else 0
        out_ch = net.channels_dict[res]
        k0 = jax.random.fold_in(key, 1000 + i)
        k1 = jax.random.fold_in(key, 2000 + i)
        p0 = (jax.random.normal(k0, (N, in_ch, res // 2, res // 2), jnp.float32)
              if in_ch > 0 else None)
        p1 = jax.random.normal(k1, (N, out_ch, res, res), jnp.float32)
        priors.append((p0, p1))

    img = net(ws, priors)
    img = jax.block_until_ready(img)
    assert img.shape == (N, img_channels, img_resolution, img_resolution), img.shape
    assert img.dtype == jnp.float32
    assert bool(jnp.all(jnp.isfinite(img)))
    print("KERNEL_OK")
</pallas_src>

<mosaic_0001>
module attributes {stable_mosaic.version = 11 : i64} {
  func.func @_matmul_kernel(%arg0: i32, %arg1: i32, %arg2: i32, %arg3: i32, %arg4: memref<1x16x128xf32, #tpu.memory_space<vmem>>, %arg5: memref<1x1x128xf32, #tpu.memory_space<vmem>>, %arg6: memref<128x128xf32, #tpu.memory_space<vmem>>, %arg7: memref<1x1x128xf32, #tpu.memory_space<vmem>>, %arg8: memref<1x16x128xf32, #tpu.memory_space<vmem>>, %arg9: memref<16x128xf32, #tpu.memory_space<vmem>>) attributes {dimension_semantics = [#tpu.dimension_semantics<parallel>, #tpu.dimension_semantics<parallel>, #tpu.dimension_semantics<parallel>, #tpu.dimension_semantics<arbitrary>], iteration_bounds = array<i64: 2, 1, 1, 1>, scalar_prefetch = 0 : i64, scratch_operands = 1 : i64, tpu.core_type = #tpu.core_type<tc>, window_params = [{transform_indices = @transform_0, window_bounds = array<i64: 1, 16, 128>}, {transform_indices = @transform_1, window_bounds = array<i64: 1, 1, 128>}, {transform_indices = @transform_2, window_bounds = array<i64: 128, 128>}, {transform_indices = @transform_3, window_bounds = array<i64: 1, 1, 128>}, {transform_indices = @transform_4, window_bounds = array<i64: 1, 16, 128>}]} {
    %c0_i32 = arith.constant 0 : i32
    %0 = arith.cmpi eq, %arg3, %c0_i32 : i32
    %1 = arith.extui %0 : i1 to i32
    %c0_i32_0 = arith.constant 0 : i32
    %2 = arith.cmpi ne, %1, %c0_i32_0 : i32
    scf.if %2 {
      %cst_14 = arith.constant 0.000000e+00 : f32
      %17 = vector.broadcast %cst_14 : f32 to vector<16x128xf32>
      %c0_15 = arith.constant 0 : index
      %c0_16 = arith.constant 0 : index
      %18 = vector.load %arg9[%c0_15, %c0_16] : memref<16x128xf32, #tpu.memory_space<vmem>>, vector<16x128xf32>
      tpu.vector_store %arg9[%c0_15, %c0_16], %17 {strides = array<i32>} : memref<16x128xf32, #tpu.memory_space<vmem>>, vector<16x128xf32>,
    } else {
    }
    %c0 = arith.constant 0 : index
    %c0_1 = arith.constant 0 : index
    %c0_2 = arith.constant 0 : index
    %3 = vector.load %arg4[%c0, %c0_1, %c0_2] : memref<1x16x128xf32, #tpu.memory_space<vmem>>, vector<1x16x128xf32>
    %4 = vector.shape_cast %3 : vector<1x16x128xf32> to vector<16x128xf32>
    %c0_3 = arith.constant 0 : index
    %c0_4 = arith.constant 0 : index
    %c0_5 = arith.constant 0 : index
    %5 = vector.load %arg5[%c0_3, %c0_4, %c0_5] : memref<1x1x128xf32, #tpu.memory_space<vmem>>, vector<1x1x128xf32>
    %6 = vector.shape_cast %5 : vector<1x1x128xf32> to vector<1x128xf32>
    %7 = vector.broadcast %6 : vector<1x128xf32> to vector<16x128xf32>
    %8 = arith.mulf %4, %7 : vector<16x128xf32>
    %c0_6 = arith.constant 0 : index
    %c0_7 = arith.constant 0 : index
    %9 = vector.load %arg9[%c0_6, %c0_7] : memref<16x128xf32, #tpu.memory_space<vmem>>, vector<16x128xf32>
    %c0_8 = arith.constant 0 : index
    %c0_9 = arith.constant 0 : index
    %10 = vector.load %arg6[%c0_8, %c0_9] : memref<128x128xf32, #tpu.memory_space<vmem>>, vector<128x128xf32>
    %cst = arith.constant dense<0.000000e+00> : vector<16x128xf32>
    %11 = tpu.matmul %8, %10, %cst {dimension_numbers = #tpu.dot_dimension_numbers<[1], [0], [0], [1], [0, 0, 1, 1], [], []>} : vector<16x128xf32>, vector<128x128xf32>, vector<16x128xf32> -> vector<16x128xf32>
    %12 = arith.addf %9, %11 : vector<16x128xf32>
    %c0_10 = arith.constant 0 : index
    %c0_11 = arith.constant 0 : index
    %13 = vector.load %arg9[%c0_10, %c0_11] : memref<16x128xf32, #tpu.memory_space<vmem>>, vector<16x128xf32>
    tpu.vector_store %arg9[%c0_10, %c0_11], %12 {strides = array<i32>} : memref<16x128xf32, #tpu.memory_space<vmem>>, vector<16x128xf32>,
    %c0_i32_12 = arith.constant 0 : i32
    %14 = arith.cmpi eq, %arg3, %c0_i32_12 : i32
    %15 = arith.extui %14 : i1 to i32
    %c0_i32_13 = arith.constant 0 : i32
    %16 = arith.cmpi ne, %15, %c0_i32_13 : i32
    scf.if %16 {
      %c0_14 = arith.constant 0 : index
      %c0_15 = arith.constant 0 : index
      %17 = vector.load %arg9[%c0_14, %c0_15] : memref<16x128xf32, #tpu.memory_space<vmem>>, vector<16x128xf32>
      %c0_16 = arith.constant 0 : index
      %c0_17 = arith.constant 0 : index
      %c0_18 = arith.constant 0 : index
      %18 = vector.load %arg7[%c0_16, %c0_17, %c0_18] : memref<1x1x128xf32, #tpu.memory_space<vmem>>, vector<1x1x128xf32>
      %19 = vector.shape_cast %18 : vector<1x1x128xf32> to vector<1x128xf32>
      %20 = vector.broadcast %19 : vector<1x128xf32> to vector<16x128xf32>
      %21 = arith.addf %17, %20 : vector<16x128xf32>
      %c0_19 = arith.constant 0 : index
      %c0_20 = arith.constant 0 : index
      %c0_21 = arith.constant 0 : index
      %22 = vector.load %arg8[%c0_19, %c0_20, %c0_21] : memref<1x16x128xf32, #tpu.memory_space<vmem>>, vector<1x16x128xf32>
      %23 = vector.shape_cast %22 : vector<1x16x128xf32> to vector<16x128xf32>
      %24 = vector.shape_cast %21 : vector<16x128xf32> to vector<1x16x128xf32>
      tpu.vector_store %arg8[%c0_19, %c0_20, %c0_21], %24 {strides = array<i32>} : memref<1x16x128xf32, #tpu.memory_space<vmem>>, vector<1x16x128xf32>,
    } else {
    }
    return
  }
  func.func @transform_0(%arg0: i32, %arg1: i32, %arg2: i32, %arg3: i32) -> (i32, i32, i32) {
    %c0_i32 = arith.constant 0 : i32
    return %arg0, %arg1, %arg3 : i32, i32, i32
  }
  func.func @transform_1(%arg0: i32, %arg1: i32, %arg2: i32, %arg3: i32) -> (i32, i32, i32) {
    %c0_i32 = arith.constant 0 : i32
    %c0_i32_0 = arith.constant 0 : i32
    return %arg0, %c0_i32, %arg3 : i32, i32, i32
  }
  func.func @transform_2(%arg0: i32, %arg1: i32, %arg2: i32, %arg3: i32) -> (i32, i32) {
    %c0_i32 = arith.constant 0 : i32
    return %arg3, %arg2 : i32, i32
  }
  func.func @transform_3(%arg0: i32, %arg1: i32, %arg2: i32, %arg3: i32) -> (i32, i32, i32) {
    %c0_i32 = arith.constant 0 : i32
    %c0_i32_0 = arith.constant 0 : i32
    %c0_i32_1 = arith.constant 0 : i32
    return %c0_i32, %c0_i32_0, %arg2 : i32, i32, i32
  }
  func.func @transform_4(%arg0: i32, %arg1: i32, %arg2: i32, %arg3: i32) -> (i32, i32, i32) {
    %c0_i32 = arith.constant 0 : i32
    return %arg0, %arg1, %arg2 : i32, i32, i32
  }
}

</mosaic_0001>

<llo_original>
// kernel: tpu_custom_call.1
$region0: #{tpu_custom_call.1}
  #allocation0 [shape = 'u32[]', space=smem, size = 0x4, offset = 0x4, fixed_abs, tag = 'smem constant byte address 0x4 - core index']
  #allocation1 [shape = 'u32[144,128]{1,0:T(1,128)}', space=vmem, size = 0x12000, scoped, tag = 'internal scratch']
  #allocation2 [shape = 'f32[16,128]{1,0:T(8,128)}', space=vmem, size = 0x2000, scoped, tag = 'scratch operand']
  %s0 = inlined_call_operand.hbm [shape: f32[2,16,128], index: 0, kind: input, shape index: {}]
  %s1 = inlined_call_operand.vmem [shape: f32[2,1,128], index: 1, kind: input, shape index: {}]
  %s2 = inlined_call_operand.hbm [shape: f32[128,128], index: 2, kind: input, shape index: {}]
  %s3 = inlined_call_operand.vmem [shape: f32[1,1,128], index: 3, kind: input, shape index: {}]
  %s4 = inlined_call_operand.hbm [shape: f32[2,16,128], index: 4, kind: output, shape index: {}]
  %s5 = sld [smem:[#allocation0]]
  $region65: #{tpu_custom_call.1} parent=0
    _
  %s7 = ssub.s32 1, %s5
  %s8 = scalar_select 0, %s7, %s5
  $region1: #{tpu_custom_call.1} parent=0
    #allocation3 [shape = 'u8[16384]{0}', space=vmem, size = 0x4000, scoped, tag = 'input window, operand 0']
    #allocation4 [shape = 's32[2]{0}', space=sflag, size = 0x8, scoped, tag = 'scoped memory for tpu_custom_call.1']
    #allocation5 [shape = 's32[2]{0}', space=sflag, size = 0x8, scoped, tag = 'scoped memory for tpu_custom_call.1']
    #allocation6 [shape = 'u8[65536]{0}', space=vmem, size = 0x10000, scoped, tag = 'input window, operand 2, single buffered']
    #allocation7 [shape = 's32[1]{0}', space=sflag, size = 0x4, scoped, tag = 'scoped memory for tpu_custom_call.1']
    #allocation8 [shape = 'u8[16384]{0}', space=vmem, size = 0x4000, scoped, tag = 'output window, operand 0']
    %9 = vsyncpa [#allocation4], 0
    %s10 = scalar_lea.sflag [#allocation4], 1
    %11 = vsyncpa %s10, 0
    %12 = vsyncpa [#allocation7], 0
    %13 = vsyncpa [#allocation5], 0
    %s14 = scalar_lea.sflag [#allocation5], 1
    %15 = vsyncpa %s14, 0
    loop: start=0, step=1, limit=4
    $region2: #{tpu_custom_call.1} parent=1 // loop_pre_header
      _
    $region3: #{tpu_custom_call.1} parent=1 // loop_header
      %s17 = sphi 0, %s21
      %p18 = scmp.ge.s32.totalorder %s17, 4
      %s24 = sphi 0, %s50
      %s25 = sphi 0, %s46
      %s26 = sphi 0, %s42
      %s27 = sphi 0, %s38
      %s28 = sphi 0, %s24
      %s29 = sphi 0, %s25
      %s30 = sphi 0, %s26
      %s31 = sphi 0, %s27
      %s32 = sphi 0, %s28
      %s33 = sphi 0, %s29
      %s34 = sphi 0, %s30
      %s35 = sphi 0, %s31
      %s57 = sphi 0, %s59
      %s60 = sphi 0, %s57
      %s61 = sphi 0, %s60
      %s77 = sphi 0, %s61
      %s85 = sphi 0, %s87
      %s88 = sphi 0, %s85
      %s89 = sphi 0, %s88
      %s105 = sphi 0, %s89
      %s113 = sphi 0, %s115
      %s116 = sphi 0, %s113
      %s117 = sphi 0, %s116
      %s133 = sphi 0, %s117
      %s139 = sphi 0, %s141
      %s142 = sphi 0, %s139
      %s143 = sphi 0, %s142
      %s159 = sphi 0, %s143
      %s169 = sphi 0, %s171
      %s172 = sphi 0, %s169
      %s173 = sphi 0, %s172
      %s189 = sphi 0, %s173
    $region4: #{tpu_custom_call.1} parent=1 // loop_header_branch
      %20 = sbr.rel (%p18) target = $region8
    $region5: #{tpu_custom_call.1} parent=1 // loop_body
      %s22 = ssub.s32 %s17, 1
      %s23 = ssub.s32 %s17, 2
      %s36 = sadd.s32 1, %s27
      %p37 = scmp.ge.s32.totalorder %s36, 1
      %s38 = scalar_select %p37, 0, %s36
      %s39 = sadd.s32 1, %s26
      %s40 = scalar_select %p37, %s39, %s26
      %p41 = scmp.ge.s32.totalorder %s40, 1
      %s42 = scalar_select %p41, 0, %s40
      %s43 = sadd.s32 1, %s25
      %s44 = scalar_select %p41, %s43, %s25
      %p45 = scmp.ge.s32.totalorder %s44, 1
      %s46 = scalar_select %p45, 0, %s44
      %s47 = sadd.s32 1, %s24
      %s48 = scalar_select %p45, %s47, %s24
      %p49 = scmp.ge.s32.totalorder %s48, 2
      %s50 = scalar_select %p49, 0, %s48
      %s51 = ssub.s32 %s24, %s50
      %s52 = ssub.s32 %s25, %s46
      %s53 = sor.u32 %s51, %s52
      %s54 = ssub.s32 %s27, %s38
      %s55 = sor.u32 %s53, %s54
      %p56 = scmp.eq.s32.totalorder %s55, 0
      %s58 = sadd.s32 %s57, 1
      %s59 = scalar_select %p56, %s57, %s58
      %p62 = pneg %p56
      %p63 = scmp.eq.s32.totalorder %s17, 1
      %p64 = por %p62, %p63
      %p65 = scmp.ne.s32.totalorder %s57, %s60
      %p66 = scmp.eq.s32.totalorder %s17, 0
      %p67 = por %p65, %p66
      %p68 = scmp.ne.s32.totalorder %s57, %s60
      %p69 = scmp.eq.s32.totalorder %s22, 1
      %p70 = por %p68, %p69
      %p71 = scmp.ne.s32.totalorder %s60, %s61
      %p72 = scmp.eq.s32.totalorder %s22, 0
      %p73 = por %p71, %p72
      %p74 = scmp.ne.s32.totalorder %s60, %s61
      %p75 = scmp.eq.s32.totalorder %s23, 1
      %p76 = por %p74, %p75
      %p78 = scmp.ne.s32.totalorder %s61, %s77
      %p79 = scmp.eq.s32.totalorder %s23, 0
      %p80 = por %p78, %p79
      %s81 = ssub.s32 %s24, %s50
      %s82 = ssub.s32 %s27, %s38
      %s83 = sor.u32 %s81, %s82
      %p84 = scmp.eq.s32.totalorder %s83, 0
      %s86 = sadd.s32 %s85, 1
      %s87 = scalar_select %p84, %s85, %s86
      %p90 = pneg %p84
      %p91 = scmp.eq.s32.totalorder %s17, 1
      %p92 = por %p90, %p91
      %p93 = scmp.ne.s32.totalorder %s85, %s88
      %p94 = scmp.eq.s32.totalorder %s17, 0
      %p95 = por %p93, %p94
      %p96 = scmp.ne.s32.totalorder %s85, %s88
      %p97 = scmp.eq.s32.totalorder %s22, 1
      %p98 = por %p96, %p97
      %p99 = scmp.ne.s32.totalorder %s88, %s89
      %p100 = scmp.eq.s32.totalorder %s22, 0
      %p101 = por %p99, %p100
      %p102 = scmp.ne.s32.totalorder %s88, %s89
      %p103 = scmp.eq.s32.totalorder %s23, 1
      %p104 = por %p102, %p103
      %p106 = scmp.ne.s32.totalorder %s89, %s105
      %p107 = scmp.eq.s32.totalorder %s23, 0
      %p108 = por %p106, %p107
      %s109 = ssub.s32 %s27, %s38
      %s110 = ssub.s32 %s26, %s42
      %s111 = sor.u32 %s109, %s110
      %p112 = scmp.eq.s32.totalorder %s111, 0
      %s114 = sadd.s32 %s113, 1
      %s115 = scalar_select %p112, %s113, %s114
      %p118 = pneg %p112
      %p119 = scmp.eq.s32.totalorder %s17, 1
      %p120 = por %p118, %p119
      %p121 = scmp.ne.s32.totalorder %s113, %s116
      %p122 = scmp.eq.s32.totalorder %s17, 0
      %p123 = por %p121, %p122
      %p124 = scmp.ne.s32.totalorder %s113, %s116
      %p125 = scmp.eq.s32.totalorder %s22, 1
      %p126 = por %p124, %p125
      %p127 = scmp.ne.s32.totalorder %s116, %s117
      %p128 = scmp.eq.s32.totalorder %s22, 0
      %p129 = por %p127, %p128
      %p130 = scmp.ne.s32.totalorder %s116, %s117
      %p131 = scmp.eq.s32.totalorder %s23, 1
      %p132 = por %p130, %p131
      %p134 = scmp.ne.s32.totalorder %s117, %s133
      %p135 = scmp.eq.s32.totalorder %s23, 0
      %p136 = por %p134, %p135
      %s137 = ssub.s32 %s26, %s42
      %p138 = scmp.eq.s32.totalorder %s137, 0
      %s140 = sadd.s32 %s139, 1
      %s141 = scalar_select %p138, %s139, %s140
      %p144 = pneg %p138
      %p145 = scmp.eq.s32.totalorder %s17, 1
      %p146 = por %p144, %p145
      %p147 = scmp.ne.s32.totalorder %s139, %s142
      %p148 = scmp.eq.s32.totalorder %s17, 0
      %p149 = por %p147, %p148
      %p150 = scmp.ne.s32.totalorder %s139, %s142
      %p151 = scmp.eq.s32.totalorder %s22, 1
      %p152 = por %p150, %p151
      %p153 = scmp.ne.s32.totalorder %s142, %s143
      %p154 = scmp.eq.s32.totalorder %s22, 0
      %p155 = por %p153, %p154
      %p156 = scmp.ne.s32.totalorder %s142, %s143
      %p157 = scmp.eq.s32.totalorder %s23, 1
      %p158 = por %p156, %p157
      %p160 = scmp.ne.s32.totalorder %s143, %s159
      %p161 = scmp.eq.s32.totalorder %s23, 0
      %p162 = por %p160, %p161
      %s163 = ssub.s32 %s24, %s50
      %s164 = ssub.s32 %s25, %s46
      %s165 = sor.u32 %s163, %s164
      %s166 = ssub.s32 %s26, %s42
      %s167 = sor.u32 %s165, %s166
      %p168 = scmp.eq.s32.totalorder %s167, 0
      %s170 = sadd.s32 %s169, 1
      %s171 = scalar_select %p168, %s169, %s170
      %p174 = pneg %p168
      %p175 = scmp.eq.s32.totalorder %s17, 1
      %p176 = por %p174, %p175
      %p177 = scmp.ne.s32.totalorder %s169, %s172
      %p178 = scmp.eq.s32.totalorder %s17, 0
      %p179 = por %p177, %p178
      %p180 = scmp.ne.s32.totalorder %s169, %s172
      %p181 = scmp.eq.s32.totalorder %s22, 1
      %p182 = por %p180, %p181
      %p183 = scmp.ne.s32.totalorder %s172, %s173
      %p184 = scmp.eq.s32.totalorder %s22, 0
      %p185 = por %p183, %p184
      %p186 = scmp.ne.s32.totalorder %s172, %s173
      %p187 = scmp.eq.s32.totalorder %s23, 1
      %p188 = por %p186, %p187
      %p190 = scmp.ne.s32.totalorder %s173, %s189
      %p191 = scmp.eq.s32.totalorder %s23, 0
      %p192 = por %p190, %p191
      %p193 = scmp.le.s32.totalorder 1, %s17
      %p194 = scmp.lt.s32.totalorder %s17, 3
      %p195 = pnand %p193, %p194
      %p196 = pneg %p195
      // Predicated region
      $region9: #{tpu_custom_call.1} parent=5 // pred_check
        _
      $region10: #{tpu_custom_call.1} parent=5 // pred_check_branch
        %198 = sbr.rel (%p195) target = $region12
      $region11: #{tpu_custom_call.1} parent=5 // pred_region
        %s199 = ssub.s32 %s17, 1
        // Predicated region
        $region13: #{tpu_custom_call.1} parent=11 // pred_check
          %p200 = pneg %p129
        $region14: #{tpu_custom_call.1} parent=11 // pred_check_branch
          %202 = sbr.rel (%p200) target = $region16
        $region15: #{tpu_custom_call.1} parent=11 // pred_region
          %s203 = smul.u32 16, %s31
          %s205 = ssub.s32 2048, 2048
          %206 = vsyncadd [#allocation7], %s205
          %s207 = sadd.s32 %s30, %s203
          %s208 = smul.addr %s207, 128
          %s209 = scalar_lea.hbm %s2, %s208
          %s210 = sshll.u32 [#allocation6], 4
          %s211 = int_to_ptr.vmem [resolvable:$true] %s210
          %216 = dma.hbm_to_vmem [thread:$0]  %s209, 2048, %s211, [#allocation7], 128, 128, 8
        $region16: #{tpu_custom_call.1} parent=11 // pred_fallthru
          _
        // Predicated region
        $region17: #{tpu_custom_call.1} parent=11 // pred_check
          %p217 = pneg %p155
        $region18: #{tpu_custom_call.1} parent=11 // pred_check_branch
          %219 = sbr.rel (%p217) target = $region20
        $region19: #{tpu_custom_call.1} parent=11 // pred_region
          %p220 = scmp.lt.s32.totalorder %s30, 0
          %s221 = scalar_select %p220, %s30, 0
          %s222 = scalar_lea.vmem %s3, %s221
        $region20: #{tpu_custom_call.1} parent=11 // pred_fallthru
          _
      $region12: #{tpu_custom_call.1} parent=5 // pred_fallthru
        _
      %p223 = scmp.lt.s32.totalorder %s17, 2
      // Predicated region
      $region21: #{tpu_custom_call.1} parent=5 // pred_check
        %p224 = pneg %p223
      $region22: #{tpu_custom_call.1} parent=5 // pred_check_branch
        %226 = sbr.rel (%p224) target = $region24
      $region23: #{tpu_custom_call.1} parent=5 // pred_region
        // Predicated region
        $region25: #{tpu_custom_call.1} parent=23 // pred_check
          %p227 = pneg %p67
        $region26: #{tpu_custom_call.1} parent=23 // pred_check_branch
          %229 = sbr.rel (%p227) target = $region28
        $region27: #{tpu_custom_call.1} parent=23 // pred_region
          %s230 = sand.u32 %s57, 1
          %s231 = scalar_lea.sflag [#allocation4], %s230
          %s232 = sand.u32 %s57, 1
          %s233 = smul.addr %s232, 16
          %s234 = scalar_lea.vmem [#allocation3], %s233
          %s235 = smul.u32 2, %s25
          %s237 = ssub.s32 256, 256
          %238 = vsyncadd %s231, %s237
          %s239 = sadd.s32 %s27, %s235
          %s240 = smul.addr %s24, 2
          %s241 = sadd.s32 %s239, %s240
          %s242 = smul.addr %s241, 128
          %s243 = scalar_lea.hbm %s0, %s242
          %s244 = sshll.u32 %s234, 4
          %s245 = int_to_ptr.vmem [resolvable:$true] %s244
          %250 = dma.hbm_to_vmem [thread:$0]  %s243, 256, %s245, %s231, 128, 128, 8
        $region28: #{tpu_custom_call.1} parent=23 // pred_fallthru
          _
        // Predicated region
        $region29: #{tpu_custom_call.1} parent=23 // pred_check
          %p251 = pneg %p95
        $region30: #{tpu_custom_call.1} parent=23 // pred_check_branch
          %253 = sbr.rel (%p251) target = $region32
        $region31: #{tpu_custom_call.1} parent=23 // pred_region
          %p254 = scmp.lt.s32.totalorder %s24, 1
          %s255 = scalar_select %p254, %s24, 1
          %p256 = scmp.lt.s32.totalorder %s27, 0
          %s257 = scalar_select %p256, %s27, 0
          %s258 = sadd.s32 %s257, %s255
          %s259 = scalar_lea.vmem %s1, %s258
        $region32: #{tpu_custom_call.1} parent=23 // pred_fallthru
          _
      $region24: #{tpu_custom_call.1} parent=5 // pred_fallthru
        _
      %p260 = scmp.le.s32.totalorder 1, %s17
      %p261 = scmp.lt.s32.totalorder %s17, 3
      %p262 = pnand %p260, %p261
      %p263 = pneg %p262
      // Predicated region
      $region33: #{tpu_custom_call.1} parent=5 // pred_check
        _
      $region34: #{tpu_custom_call.1} parent=5 // pred_check_branch
        %265 = sbr.rel (%p262) target = $region36
      $region35: #{tpu_custom_call.1} parent=5 // pred_region
        %s266 = ssub.s32 %s17, 1
        %s267 = sand.u32 %s60, 1
        %s268 = scalar_lea.sflag [#allocation4], %s267
        %s269 = sand.u32 %s60, 1
        %s270 = smul.addr %s269, 16
        %s271 = scalar_lea.vmem [#allocation3], %s270
        // Predicated region
        $region37: #{tpu_custom_call.1} parent=35 // pred_check
          %p272 = pneg %p73
        $region38: #{tpu_custom_call.1} parent=35 // pred_check_branch
          %274 = sbr.rel (%p272) target = $region40
        $region39: #{tpu_custom_call.1} parent=35 // pred_region
          %275 = dma.done %s268, 256
        $region40: #{tpu_custom_call.1} parent=35 // pred_fallthru
          _
        // Predicated region
        $region41: #{tpu_custom_call.1} parent=35 // pred_check
          %p276 = pneg %p129
        $region42: #{tpu_custom_call.1} parent=35 // pred_check_branch
          %278 = sbr.rel (%p276) target = $region44
        $region43: #{tpu_custom_call.1} parent=35 // pred_region
          %279 = dma.done [#allocation7], 2048
        $region44: #{tpu_custom_call.1} parent=35 // pred_fallthru
          _
        %s280 = sand.u32 %s60, 1
        %s281 = scalar_lea.sflag [#allocation4], %s280
        %s282 = sand.u32 %s60, 1
        %s283 = smul.addr %s282, 16
        %s284 = scalar_lea.vmem [#allocation3], %s283
        %p285 = pneg %p73
        %p286 = pneg %p70
        %p287 = scmp.lt.s32.totalorder %s28, 1
        %s288 = scalar_select %p287, %s28, 1
        %p289 = scmp.lt.s32.totalorder %s31, 0
        %s290 = scalar_select %p289, %s31, 0
        %s291 = sadd.s32 %s290, %s288
        %s292 = scalar_lea.vmem %s1, %s291
        %p293 = pneg %p101
        %p294 = pneg %p98
        %p295 = pneg %p129
        %p296 = pneg %p126
        %p297 = scmp.lt.s32.totalorder %s30, 0
        %s298 = scalar_select %p297, %s30, 0
        %s299 = scalar_lea.vmem %s3, %s298
        %p300 = pneg %p155
        %p301 = pneg %p152
        %p302 = pneg %p185
        %p303 = pneg %p182
        %s304 = sand.u32 %s172, 1
        %s305 = scalar_lea.sflag [#allocation5], %s304
        %s306 = sand.u32 %s172, 1
        %s307 = smul.addr %s306, 16
        %s308 = scalar_lea.vmem [#allocation8], %s307
        %s309 = smul.u32 2, %s29
        %p310 = scmp.lt.s32.totalorder %s28, 1
        %s311 = scalar_select %p310, %s28, 1
        %p312 = scmp.lt.s32.totalorder %s31, 0
        %s313 = scalar_select %p312, %s31, 0
        %s314 = sadd.s32 %s313, %s311
        %s315 = scalar_lea.vmem %s1, %s314
        %s316 = smul.u32 16, %s31
        %p317 = scmp.lt.s32.totalorder %s30, 0
        %s318 = scalar_select %p317, %s30, 0
        %s319 = scalar_lea.vmem %s3, %s318
        %s320 = smul.u32 2, %s29
        %p321 = scmp.eq.s32.totalorder %s31, 0
        // Predicated region
        $region45: #{tpu_custom_call.1} parent=35 // pred_check
          %p322 = pneg %p321
        $region46: #{tpu_custom_call.1} parent=35 // pred_check_branch
          %324 = sbr.rel (%p322) target = $region48
        $region47: #{tpu_custom_call.1} parent=35 // pred_region
          %325 = vst [vmem:[#allocation2] sm:$0xff] 0.0
          %326 = vst [vmem:[#allocation2 + $0x8] sm:$0xff] 0.0
        $region48: #{tpu_custom_call.1} parent=35 // pred_fallthru
          _
        %v327 = vld [vmem:[%s271] sm:$0xff]
        %v328 = vld [vmem:[%s271 + $0x8] sm:$0xff]
        %v329 = vld [vmem:[%s315] sm:$0x1]
        %v331 = vlaneseq
        %v332 = vshrl.u32 %v331, 7
        %v333 = vsub.s32 0, %v332
        %v334 = vrot.slane %v329, %v333
        %v336 = vmul.f32 %v327, %v334
        %v337 = vmul.f32 %v328, %v334
        %v338 = vld [vmem:[#allocation2] sm:$0xff]
        %v339 = vld [vmem:[#allocation2 + $0x8] sm:$0xff]
        %v340 = vld [vmem:[#allocation6] sm:$0xff]
        %v341 = vld [vmem:[#allocation6 + $0x8] sm:$0xff]
        %v342 = vld [vmem:[#allocation6 + $0x10] sm:$0xff]
        %v343 = vld [vmem:[#allocation6 + $0x18] sm:$0xff]
        %v344 = vld [vmem:[#allocation6 + $0x20] sm:$0xff]
        %v345 = vld [vmem:[#allocation6 + $0x28] sm:$0xff]
        %v346 = vld [vmem:[#allocation6 + $0x30] sm:$0xff]
        %v347 = vld [vmem:[#allocation6 + $0x38] sm:$0xff]
        %v348 = vld [vmem:[#allocation6 + $0x40] sm:$0xff]
        %v349 = vld [vmem:[#allocation6 + $0x48] sm:$0xff]
        %v350 = vld [vmem:[#allocation6 + $0x50] sm:$0xff]
        %v351 = vld [vmem:[#allocation6 + $0x58] sm:$0xff]
        %v352 = vld [vmem:[#allocation6 + $0x60] sm:$0xff]
        %v353 = vld [vmem:[#allocation6 + $0x68] sm:$0xff]
        %v354 = vld [vmem:[#allocation6 + $0x70] sm:$0xff]
        %v355 = vld [vmem:[#allocation6 + $0x78] sm:$0xff]
        %356 = vmatprep.subr.mxu0 0.0
        %357 = vmatpush1.msra.mxu0 %v340
        %358 = vmatprep.subr.mxu0 0.0
        %359 = vmatpush1.msra.mxu0 %v341
        %360 = vmatprep.subr.mxu0 0.0
        %361 = vmatpush1.msra.mxu0 %v342
        %362 = vmatprep.subr.mxu0 0.0
        %363 = vmatpush1.msra.mxu0 %v343
        %364 = vmatprep.subr.mxu0 0.0
        %365 = vmatpush1.msra.mxu0 %v344
        %366 = vmatprep.subr.mxu0 0.0
        %367 = vmatpush1.msra.mxu0 %v345
        %368 = vmatprep.subr.mxu0 0.0
        %369 = vmatpush1.msra.mxu0 %v346
        %370 = vmatprep.subr.mxu0 0.0
        %371 = vmatpush1.msra.mxu0 %v347
        %372 = vmatprep.subr.mxu0 0.0
        %373 = vmatpush1.msra.mxu0 %v348
        %374 = vmatprep.subr.mxu0 0.0
        %375 = vmatpush1.msra.mxu0 %v349
        %376 = vmatprep.subr.mxu0 0.0
        %377 = vmatpush1.msra.mxu0 %v350
        %378 = vmatprep.subr.mxu0 0.0
        %379 = vmatpush1.msra.mxu0 %v351
        %380 = vmatprep.subr.mxu0 0.0
        %381 = vmatpush1.msra.mxu0 %v352
        %382 = vmatprep.subr.mxu0 0.0
        %383 = vmatpush1.msra.mxu0 %v353
        %384 = vmatprep.subr.mxu0 0.0
        %385 = vmatpush1.msra.mxu0 %v354
        %386 = vmatprep.subr.mxu0 0.0
        %387 = vmatpush1.msra.mxu0 %v355
        %388 = vmatprep.subr.mxu0 0.0
        %389 = vmatpush1.msra.mxu0 0.0
        %390 = vmatprep.subr.mxu0 0.0
        %391 = vmatpush1.msra.mxu0 0.0
        %392 = vmatprep.subr.mxu0 0.0
        %393 = vmatpush1.msra.mxu0 0.0
        %394 = vmatprep.subr.mxu0 0.0
        %395 = vmatpush1.msra.mxu0 0.0
        %396 = vmatprep.subr.mxu0 0.0
        %397 = vmatpush1.msra.mxu0 0.0
        %398 = vmatprep.subr.mxu0 0.0
        %399 = vmatpush1.msra.mxu0 0.0
        %400 = vmatprep.subr.mxu0 0.0
        %401 = vmatpush1.msra.mxu0 0.0
        %402 = vmatprep.subr.mxu0 0.0
        %403 = vmatpush1.msra.mxu0 0.0
        %404 = vmatprep.subr.mxu0 0.0
        %405 = vmatpush1.msra.mxu0 0.0
        %406 = vmatprep.subr.mxu0 0.0
        %407 = vmatpush1.msra.mxu0 0.0
        %408 = vmatprep.subr.mxu0 0.0
        %409 = vmatpush1.msra.mxu0 0.0
        %410 = vmatprep.subr.mxu0 0.0
        %411 = vmatpush1.msra.mxu0 0.0
        %412 = vmatprep.subr.mxu0 0.0
        %413 = vmatpush1.msra.mxu0 0.0
        %414 = vmatprep.subr.mxu0 0.0
        %415 = vmatpush1.msra.mxu0 0.0
        %416 = vmatprep.subr.mxu0 0.0
        %417 = vmatpush1.msra.mxu0 0.0
        %418 = vmatprep.subr.mxu0 0.0
        %419 = vmatpush1.msra.mxu0 0.0
        %420 = vmatprep.mubr.f32.mxu0 0.0
        %421 = vmatmul.mubr.f32.gmra.mrb[0].mxu0 %v336
        %v422 = vpop.f32.mrb[0].mxu0
        %v423 = vadd.f32 0.0, %v422
        %v424 = vpop.f32.mrb[0].mxu0
        %425 = vmatprep.mubr.f32.mxu0 0.0
        %426 = vmatmul.mubr.f32.gmra.mrb[0].mxu0 %v337
        %v427 = vpop.f32.mrb[0].mxu0
        %v428 = vadd.f32 0.0, %v427
        %v429 = vpop.f32.mrb[0].mxu0
        %430 = vdwg.mxu0
        %v431 = vadd.f32 %v338, %v423
        %v432 = vadd.f32 %v339, %v428
        %433 = vst [vmem:[#allocation2] sm:$0xff] %v431
        %434 = vst [vmem:[#allocation2 + $0x8] sm:$0xff] %v432
        // Predicated region
        $region49: #{tpu_custom_call.1} parent=35 // pred_check
          %p435 = pneg %p321
        $region50: #{tpu_custom_call.1} parent=35 // pred_check_branch
          %437 = sbr.rel (%p435) target = $region52
        $region51: #{tpu_custom_call.1} parent=35 // pred_region
          %v438 = vld [vmem:[#allocation2] sm:$0xff]
          %v439 = vld [vmem:[#allocation2 + $0x8] sm:$0xff]
          %v440 = vld [vmem:[%s319] sm:$0x1]
          %v442 = vlaneseq
          %v443 = vshrl.u32 %v442, 7
          %v444 = vsub.s32 0, %v443
          %v445 = vrot.slane %v440, %v444
          %v447 = vadd.f32 %v438, %v445
          %v448 = vadd.f32 %v439, %v445
          %449 = vst [vmem:[%s308] sm:$0xff] %v447
          %450 = vst [vmem:[%s308 + $0x8] sm:$0xff] %v448
        $region52: #{tpu_custom_call.1} parent=35 // pred_fallthru
          _
        %s451 = sand.u32 %s172, 1
        %s452 = scalar_lea.sflag [#allocation5], %s451
        %s453 = sand.u32 %s172, 1
        %s454 = smul.addr %s453, 16
        %s455 = scalar_lea.vmem [#allocation8], %s454
        // Predicated region
        $region53: #{tpu_custom_call.1} parent=35 // pred_check
          %p456 = pneg %p182
        $region54: #{tpu_custom_call.1} parent=35 // pred_check_branch
          %458 = sbr.rel (%p456) target = $region56
        $region55: #{tpu_custom_call.1} parent=35 // pred_region
          %s459 = smul.u32 2, %s29
          %s461 = ssub.s32 256, 256
          %462 = vsyncadd %s452, %s461
          %s463 = sadd.s32 %s30, %s459
          %s464 = smul.addr %s28, 2
          %s465 = sadd.s32 %s463, %s464
          %s466 = smul.addr %s465, 128
          %s467 = scalar_lea.hbm %s4, %s466
          %s468 = sshll.u32 %s455, 4
          %s469 = int_to_ptr.vmem [resolvable:$true] %s468
          %474 = dma.vmem_to_hbm [thread:$0]  %s469, 256, %s467, %s452, 128, 128, 8
        $region56: #{tpu_custom_call.1} parent=35 // pred_fallthru
          _
      $region36: #{tpu_custom_call.1} parent=5 // pred_fallthru
        _
      %p475 = scmp.le.s32.totalorder 2, %s17
      // Predicated region
      $region57: #{tpu_custom_call.1} parent=5 // pred_check
        %p476 = pneg %p475
      $region58: #{tpu_custom_call.1} parent=5 // pred_check_branch
        %478 = sbr.rel (%p476) target = $region60
      $region59: #{tpu_custom_call.1} parent=5 // pred_region
        %s479 = ssub.s32 %s17, 2
        // Predicated region
        $region61: #{tpu_custom_call.1} parent=59 // pred_check
          %p480 = pneg %p188
        $region62: #{tpu_custom_call.1} parent=59 // pred_check_branch
          %482 = sbr.rel (%p480) target = $region64
        $region63: #{tpu_custom_call.1} parent=59 // pred_region
          %s483 = sand.u32 %s173, 1
          %s484 = scalar_lea.sflag [#allocation5], %s483
          %s485 = sand.u32 %s173, 1
          %s486 = smul.addr %s485, 16
          %s487 = scalar_lea.vmem [#allocation8], %s486
          %488 = dma.done %s484, 256
        $region64: #{tpu_custom_call.1} parent=59 // pred_fallthru
          _
      $region60: #{tpu_custom_call.1} parent=5 // pred_fallthru
        _
    $region6: #{tpu_custom_call.1} parent=1 // loop_footer
      %s21 = sadd.s32 1, %s17
    $region7: #{tpu_custom_call.1} parent=1 // loop_footer_branch
      %16 = sbr.rel target = $region3
    $region8: #{tpu_custom_call.1} parent=1 // loop_exit
      _
    %489 = vsyncpa [#allocation4], 1
    %s490 = scalar_lea.sflag [#allocation4], 1
    %491 = vsyncpa %s490, 1
    %492 = vsyncpa [#allocation7], 1
    %493 = vsyncpa [#allocation5], 1
    %s494 = scalar_lea.sflag [#allocation5], 1
    %495 = vsyncpa %s494, 1

</llo_original>
